<compile_context>
chip_gen: v7x
topology: tpu7x:2x2x1
jax: 0.10.0
libtpu: 0.0.40
codegen_flags: <defaults>
</compile_context>

<pallas_src>
import functools

import jax
import jax.numpy as jnp
from jax.experimental import pallas as pl
from jax.experimental.pallas import tpu as pltpu


def _round_up(v, m):
  return (v + m - 1) // m * m


def _tile_rows(v, reps):
  return v if reps == 1 else jnp.concatenate([v] * reps, axis=0)


def _scale_shift_conv1d_kernel(
    x_ref, emb_ref, par_ref, w2_ref, o_ref, *,
    n_groups, kernel_size, stride, padding, eps, l_out, p_pitch, mish_dtype):
  bt, c_in, length = x_ref.shape
  c_out = o_ref.shape[1]
  l_out_pad = o_ref.shape[2]
  cg = c_in // n_groups
  rows = bt * c_in                       # (sample, channel) rows, batch tile fused
  groups = bt * n_groups                 # (sample, group) stat rows
  inv_n = 1.0 / float(cg * length)
  ncw = bt * p_pitch                     # lanes of the wide stride-1 conv grid

  # ---- packed params: ONE DMA delivers gamma / beta / conv bias ----
  gamma = par_ref[0:c_in, 0:1]                       # (C_in, 1)
  beta = par_ref[0:c_in, 1:2]                        # (C_in, 1)
  bias = par_ref[0:c_out, 2:3]                       # (C_out, 1)
  w2 = w2_ref[...]                                   # (C_out, K*C_in) bf16

  # ---- whole batch tile as one (bt*C_in, L) slab: no Python batch loop ----
  x = x_ref[...].reshape(rows, length).astype(jnp.float32)
  emb = emb_ref[...].astype(jnp.float32)             # (bt, 2*C_in, 1)
  scale1 = (1.0 + emb[:, :c_in, :]).reshape(rows, 1)  # 1 + FiLM scale
  shift = emb[:, c_in:, :].reshape(rows, 1)
  gamma_b = _tile_rows(gamma, bt)                    # (rows, 1)
  beta_b = _tile_rows(beta, bt)

  # ---- GroupNorm stats: single pass over x + two tiny matmuls.  Channels of each
  # sample are contiguous rows, so the per-(sample, group) reduction is the SAME
  # iota-built one-hot with bt*n_groups contiguous groups of size cg (hoisted,
  # built once per grid step, no per-sample loop). ----
  c_idx = jax.lax.broadcasted_iota(jnp.int32, (groups, rows), 1)
  g_idx = jax.lax.broadcasted_iota(jnp.int32, (groups, rows), 0)
  gmat = ((c_idx >= g_idx * cg) & (c_idx < (g_idx + 1) * cg)).astype(jnp.float32)
  c_idx_t = jax.lax.broadcasted_iota(jnp.int32, (rows, groups), 0)
  g_idx_t = jax.lax.broadcasted_iota(jnp.int32, (rows, groups), 1)
  gmat_t = ((c_idx_t >= g_idx_t * cg)
            & (c_idx_t < (g_idx_t + 1) * cg)).astype(jnp.float32)

  s1 = jnp.sum(x, axis=1, keepdims=True)             # (rows, 1)
  s2 = jnp.sum(x * x, axis=1, keepdims=True)
  stats = jnp.concatenate([s1, s2], axis=1)          # (rows, 2)
  gstats = jnp.dot(gmat, stats, preferred_element_type=jnp.float32) * inv_n
  gmean = gstats[:, 0:1]                             # (groups, 1)
  # TODO(synk): single-pass E[x^2]-E[x]^2 can cancel when |mean| >> std.
  gvar = gstats[:, 1:2] - gmean * gmean
  ginv = jax.lax.rsqrt(gvar + eps)
  cmi = jnp.dot(gmat_t, jnp.concatenate([gmean, ginv], axis=1),
                preferred_element_type=jnp.float32)  # (rows, 2)
  mean_c = cmi[:, 0:1]
  inv_c = cmi[:, 1:2]

  # ---- GroupNorm affine + FiLM scale/shift fused into ONE per-row FMA ----
  a_vec = inv_c * gamma_b * scale1
  b_vec = (beta_b - mean_c * inv_c * gamma_b) * scale1 + shift
  xs = x * a_vec + b_vec                             # one (rows, L) pass

  # ---- Mish: x*tanh(softplus(x)) = x * u(u+2) / (u(u+2)+2), u = exp(x) ----
  # exp + the polynomial run in `mish_dtype` (bf16 default: 2 elems/lane on the
  # v6e/v7x EUP/VPU; pass jnp.float32 on v5e).  The approx reciprocal stays f32
  # because pl.reciprocal only lowers for float32.
  u = jnp.exp(jnp.minimum(xs, 20.0).astype(mish_dtype))
  num = (u * (2.0 + u)).astype(jnp.float32)          # = (1+u)^2 - 1, cancellation-free
  xm = (xs * num * pl.reciprocal(num + 2.0, approx=True)).astype(jnp.bfloat16)
  # Dropout(p=0.0) / eval mode is the identity.
  # TODO(synk): training-mode dropout with p>0 would need pltpu.prng_random_bits.

  # ---- conv zero-padding (nn.Conv1d semantics), zeros built once, sample-major ----
  left = padding
  right = p_pitch - padding - length
  parts = []
  if left > 0:
    parts.append(jnp.zeros((rows, left), jnp.bfloat16))
  parts.append(xm)
  if right > 0:
    parts.append(jnp.zeros((rows, right), jnp.bfloat16))
  xp = jnp.concatenate(parts, axis=1) if len(parts) > 1 else xm    # (rows, P)

  # ---- lay the batch tile out lane-dense for the MXU: (C_in, bt*P) ----
  if bt > 1:
    xpw = jnp.concatenate(
        [xp[t * c_in:(t + 1) * c_in, :] for t in range(bt)], axis=1)
  else:
    xpw = xp
  if kernel_size > 1:     # K-1 trailing zero lanes keep every tap slice in-bounds
    xpw = jnp.concatenate(
        [xpw, jnp.zeros((c_in, kernel_size - 1), jnp.bfloat16)], axis=1)

  # ---- conv: K taps folded into the contraction -> ONE wide bf16 MXU matmul ----
  stacked = jnp.concatenate(
      [xpw[:, k:k + ncw] for k in range(kernel_size)], axis=0)     # (K*C_in, bt*P)
  out = jnp.dot(w2, stacked, preferred_element_type=jnp.float32)   # (C_out, bt*P)

  if stride == 1:
    out = out + bias
    for t in range(bt):   # aligned lane-slice stores (t*P is a multiple of 128)
      o_ref[t] = out[:, t * p_pitch:t * p_pitch + l_out_pad].astype(o_ref.dtype)
  else:
    # Downsample the (small) stride-1 result with a 0/1 selection matmul in bf16
    # (f32 matmuls are emulated in multiple bf16 passes on v6e/v7x).  The selection
    # matrix is built ONCE, outside the tiny per-sample store loop.
    src = jax.lax.broadcasted_iota(jnp.int32, (p_pitch, l_out_pad), 0)
    dst = jax.lax.broadcasted_iota(jnp.int32, (p_pitch, l_out_pad), 1)
    sel = ((src == dst * stride) & (dst < l_out)).astype(jnp.bfloat16)
    outb = (out + bias).astype(jnp.bfloat16)
    for t in range(bt):
      seg = outb[:, t * p_pitch:(t + 1) * p_pitch]
      o_ref[t] = jnp.dot(seg, sel,
                         preferred_element_type=jnp.float32).astype(o_ref.dtype)


def scale_shift_conv1d_block(x, embed, params, *, n_groups=8, kernel_size=3,
                             stride=1, padding=0, eps=1e-5, batch_tile=None,
                             mish_dtype=jnp.bfloat16, out_dtype=None):
  """x: (B, C_in, L), embed: (B, 2*C_in, 1) -> (B, C_out, L_out)."""
  gamma, beta, w, b = params["gn_w"], params["gn_b"], params["w"], params["b"]
  B, c_in, L = x.shape
  c_out = w.shape[0]
  assert c_in % n_groups == 0, "GroupNorm requires C_in % n_groups == 0"
  assert w.shape == (c_out, c_in, kernel_size)

  l_conv = L + 2 * padding
  l_out = (l_conv - kernel_size) // stride + 1
  assert l_out >= 1
  l_out_pad = _round_up(l_out, 128)       # lane-dense output stores
  p_pitch = _round_up(l_conv, 128)        # per-sample lane pitch of the stride-1 grid

  emb = embed if embed.ndim == 3 else embed[:, :, None]

  # Conv weight packed so the K taps live in the contraction dim: (C_out, K*C_in) bf16.
  w2 = jnp.transpose(w, (2, 1, 0)).reshape(kernel_size * c_in, c_out).T
  w2 = w2.astype(jnp.bfloat16)
  # gamma / beta / conv bias merged into ONE packed f32 param array (one DMA, not 3
  # width-1 masked DMAs).
  c_max = max(c_in, c_out)
  par = jnp.zeros((c_max, 3), jnp.float32)
  par = par.at[:c_in, 0].set(gamma.astype(jnp.float32))
  par = par.at[:c_in, 1].set(beta.astype(jnp.float32))
  par = par.at[:c_out, 2].set(b.astype(jnp.float32))

  # Rough per-sample VMEM working set (double-buffered blocks + in-kernel temporaries).
  per_sample = (4 * c_in * L * 4                         # x block (2x) + f32 temps
                + 2 * c_out * l_out_pad * 4              # output block (2x)
                + (kernel_size + 3) * c_in * p_pitch * 2  # bf16 xm/xp/xpw/stacked
                + c_out * p_pitch * 4)                   # f32 conv result

  # Batch tile: amortizes the ~0.35us/step overhead, but (a) keep >= 2 grid steps so
  # v7x's two TensorCores both get work, and (b) keep the working set well inside
  # v7x's 64 MiB VMEM.  The auto choice always divides B (no wrapper batch jnp.pad).
  if batch_tile is None:
    cap = max(1, B // 2)
    bt = 1
    for d in range(1, cap + 1):
      if B % d == 0 and d * per_sample <= 40 * 1024 * 1024:
        bt = d
  else:
    bt = max(1, min(batch_tile, B))

  b_pad = _round_up(B, bt)
  if b_pad != B:                          # only for explicitly requested batch_tile
    x = jnp.pad(x, ((0, b_pad - B), (0, 0), (0, 0)))
    emb = jnp.pad(emb, ((0, b_pad - B), (0, 0), (0, 0)))

  # Raise scoped VMEM above the per-generation default when needed; 48 MiB stays
  # inside every generation's physical VMEM (v7x: 64 MiB).
  vmem_limit = int(min(48 * 1024 * 1024,
                       max(32 * 1024 * 1024, 2 * bt * per_sample)))

  kernel = functools.partial(
      _scale_shift_conv1d_kernel, n_groups=n_groups, kernel_size=kernel_size,
      stride=stride, padding=padding, eps=eps, l_out=l_out, p_pitch=p_pitch,
      mish_dtype=mish_dtype)

  out = pl.pallas_call(
      kernel,
      out_shape=jax.ShapeDtypeStruct((b_pad, c_out, l_out_pad),
                                     out_dtype or x.dtype),
      grid=(b_pad // bt,),
      in_specs=[
          pl.BlockSpec((bt, c_in, L), lambda i: (i, 0, 0)),             # x
          pl.BlockSpec((bt, 2 * c_in, 1), lambda i: (i, 0, 0)),         # embed
          pl.BlockSpec((c_max, 3), lambda i: (0, 0)),                   # gamma|beta|bias
          pl.BlockSpec((c_out, kernel_size * c_in), lambda i: (0, 0)),  # packed conv W
      ],
      out_specs=pl.BlockSpec((bt, c_out, l_out_pad), lambda i: (i, 0, 0)),
      compiler_params=pltpu.CompilerParams(
          dimension_semantics=("parallel",),
          vmem_limit_bytes=vmem_limit),
  )(x, emb, par, w2)

  # TODO(synk): callers that can consume the lane-padded (B, C_out, l_out_pad) slab
  # directly should skip this slice (an extra HBM pass at mem-bound shapes).
  return out[:B, :, :l_out]


def _reference(x, embed, params, *, n_groups=8, stride=1, padding=0, eps=1e-5):
  B, C, L = x.shape
  xg = x.reshape(B, n_groups, -1)
  mean = xg.mean(axis=2, keepdims=True)
  var = ((xg - mean) ** 2).mean(axis=2, keepdims=True)
  xn = ((xg - mean) / jnp.sqrt(var + eps)).reshape(B, C, L)
  xn = xn * params["gn_w"][None, :, None] + params["gn_b"][None, :, None]
  scale, shift = jnp.split(embed, 2, axis=1)
  xs = xn * (1.0 + scale) + shift
  xm = xs * jnp.tanh(jax.nn.softplus(xs))
  out = jax.lax.conv_general_dilated(
      xm, params["w"], window_strides=(stride,), padding=[(padding, padding)],
      dimension_numbers=("NCH", "OIH", "NCH"),
      precision=jax.lax.Precision.HIGHEST)
  return out + params["b"][None, :, None]


if __name__ == "__main__":
  B, C_IN, C_OUT, L, K, G = 2, 16, 32, 32, 3, 8

  key = jax.random.PRNGKey(0)
  k1, k2, k3, k4, k5, k6 = jax.random.split(key, 6)
  x = jax.random.normal(k1, (B, C_IN, L), jnp.float32)
  embed = jax.random.normal(k2, (B, 2 * C_IN, 1), jnp.float32)
  params = dict(
      gn_w=1.0 + 0.1 * jax.random.normal(k3, (C_IN,), jnp.float32),
      gn_b=0.1 * jax.random.normal(k4, (C_IN,), jnp.float32),
      w=jax.random.normal(k5, (C_OUT, C_IN, K), jnp.float32)
        / jnp.sqrt(float(C_IN * K)),
      b=0.1 * jax.random.normal(k6, (C_OUT,), jnp.float32),
  )

  # bf16 MXU inputs + bf16 Mish transcendental (f32 accumulation everywhere)
  # -> tolerance is bf16-level, not f32-level.
  TOL = 5e-2
  configs = [
      dict(stride=1, padding=0, batch_tile=None),  # auto bt=1 -> 2 "parallel" steps
      dict(stride=1, padding=1, batch_tile=2),     # batch tile fused into ONE wide matmul
      dict(stride=2, padding=1, batch_tile=1),     # strided conv via bf16 downsample
      dict(stride=2, padding=1, batch_tile=2),     # wide matmul + strided downsample
  ]
  for cfg in configs:
    out = scale_shift_conv1d_block(
        x, embed, params, n_groups=G, kernel_size=K, eps=1e-5, **cfg)
    out = jax.block_until_ready(out)
    l_out = (L + 2 * cfg["padding"] - K) // cfg["stride"] + 1
    assert out.shape == (B, C_OUT, l_out), (out.shape, cfg)
    ref = _reference(x, embed, params, n_groups=G,
                     stride=cfg["stride"], padding=cfg["padding"])
    err = float(jnp.max(jnp.abs(out - ref)))
    assert err < TOL, f"max abs err {err} for {cfg}"

  print("KERNEL_OK")
</pallas_src>

<mosaic_0001>
module attributes {stable_mosaic.version = 11 : i64} {
  func.func @_scale_shift_conv1d_kernel(%arg0: i32, %arg1: memref<1x16x32xf32, #tpu.memory_space<vmem>>, %arg2: memref<1x32x1xf32, #tpu.memory_space<vmem>>, %arg3: memref<32x3xf32, #tpu.memory_space<vmem>>, %arg4: memref<32x48xbf16, #tpu.memory_space<vmem>>, %arg5: memref<1x32x128xf32, #tpu.memory_space<vmem>>) attributes {dimension_semantics = [#tpu.dimension_semantics<parallel>], iteration_bounds = array<i64: 2>, scalar_prefetch = 0 : i64, scratch_operands = 0 : i64, tpu.core_type = #tpu.core_type<tc>, window_params = [{transform_indices = @transform_0, window_bounds = array<i64: 1, 16, 32>}, {transform_indices = @transform_1, window_bounds = array<i64: 1, 32, 1>}, {pipeline_mode = #tpu.pipeline_mode<synchronous>, transform_indices = @transform_2, window_bounds = array<i64: 32, 3>}, {pipeline_mode = #tpu.pipeline_mode<synchronous>, transform_indices = @transform_3, window_bounds = array<i64: 32, 48>}, {transform_indices = @transform_4, window_bounds = array<i64: 1, 32, 128>}]} {
    %c0 = arith.constant 0 : index
    %c0_0 = arith.constant 0 : index
    %0 = vector.load %arg3[%c0, %c0_0] : memref<32x3xf32, #tpu.memory_space<vmem>>, vector<16x1xf32>
    %c0_1 = arith.constant 0 : index
    %c1 = arith.constant 1 : index
    %1 = vector.load %arg3[%c0_1, %c1] : memref<32x3xf32, #tpu.memory_space<vmem>>, vector<16x1xf32>
    %c0_2 = arith.constant 0 : index
    %c2 = arith.constant 2 : index
    %2 = vector.load %arg3[%c0_2, %c2] : memref<32x3xf32, #tpu.memory_space<vmem>>, vector<32x1xf32>
    %c0_3 = arith.constant 0 : index
    %c0_4 = arith.constant 0 : index
    %3 = vector.load %arg4[%c0_3, %c0_4] : memref<32x48xbf16, #tpu.memory_space<vmem>>, vector<32x48xbf16>
    %c0_5 = arith.constant 0 : index
    %c0_6 = arith.constant 0 : index
    %c0_7 = arith.constant 0 : index
    %4 = vector.load %arg1[%c0_5, %c0_6, %c0_7] : memref<1x16x32xf32, #tpu.memory_space<vmem>>, vector<1x16x32xf32>
    %5 = vector.shape_cast %4 : vector<1x16x32xf32> to vector<16x32xf32>
    %c0_8 = arith.constant 0 : index
    %c0_9 = arith.constant 0 : index
    %c0_10 = arith.constant 0 : index
    %6 = vector.load %arg2[%c0_8, %c0_9, %c0_10] : memref<1x32x1xf32, #tpu.memory_space<vmem>>, vector<1x32x1xf32>
    %7 = vector.extract_strided_slice %6 {offsets = [0, 0, 0], sizes = [1, 16, 1], strides = [1, 1, 1]} : vector<1x32x1xf32> to vector<1x16x1xf32>
    %cst = arith.constant 1.000000e+00 : f32
    %8 = vector.broadcast %cst : f32 to vector<1x16x1xf32>
    %9 = arith.addf %8, %7 : vector<1x16x1xf32>
    %10 = vector.shape_cast %9 : vector<1x16x1xf32> to vector<16x1xf32>
    %11 = vector.extract_strided_slice %6 {offsets = [0, 16, 0], sizes = [1, 16, 1], strides = [1, 1, 1]} : vector<1x32x1xf32> to vector<1x16x1xf32>
    %12 = vector.shape_cast %11 : vector<1x16x1xf32> to vector<16x1xf32>
    %13 = tpu.iota {dimensions = array<i32: 1>} : vector<8x16xi32>
    %14 = tpu.iota {dimensions = array<i32: 0>} : vector<8x16xi32>
    %c2_i32 = arith.constant 2 : i32
    %15 = vector.broadcast %c2_i32 : i32 to vector<8x16xi32>
    %16 = arith.muli %14, %15 : vector<8x16xi32>
    %17 = arith.cmpi sge, %13, %16 : vector<8x16xi32>
    %c1_i32 = arith.constant 1 : i32
    %18 = vector.broadcast %c1_i32 : i32 to vector<8x16xi32>
    %19 = arith.addi %14, %18 : vector<8x16xi32>
    %c2_i32_11 = arith.constant 2 : i32
    %20 = vector.broadcast %c2_i32_11 : i32 to vector<8x16xi32>
    %21 = arith.muli %19, %20 : vector<8x16xi32>
    %22 = arith.cmpi slt, %13, %21 : vector<8x16xi32>
    %23 = arith.andi %17, %22 : vector<8x16xi1>
    %24 = arith.extui %23 : vector<8x16xi1> to vector<8x16xi32>
    %25 = arith.sitofp %24 : vector<8x16xi32> to vector<8x16xf32>
    %26 = tpu.iota {dimensions = array<i32: 0>} : vector<16x8xi32>
    %27 = tpu.iota {dimensions = array<i32: 1>} : vector<16x8xi32>
    %c2_i32_12 = arith.constant 2 : i32
    %28 = vector.broadcast %c2_i32_12 : i32 to vector<16x8xi32>
    %29 = arith.muli %27, %28 : vector<16x8xi32>
    %30 = arith.cmpi sge, %26, %29 : vector<16x8xi32>
    %c1_i32_13 = arith.constant 1 : i32
    %31 = vector.broadcast %c1_i32_13 : i32 to vector<16x8xi32>
    %32 = arith.addi %27, %31 : vector<16x8xi32>
    %c2_i32_14 = arith.constant 2 : i32
    %33 = vector.broadcast %c2_i32_14 : i32 to vector<16x8xi32>
    %34 = arith.muli %32, %33 : vector<16x8xi32>
    %35 = arith.cmpi slt, %26, %34 : vector<16x8xi32>
    %36 = arith.andi %30, %35 : vector<16x8xi1>
    %37 = arith.extui %36 : vector<16x8xi1> to vector<16x8xi32>
    %38 = arith.sitofp %37 : vector<16x8xi32> to vector<16x8xf32>
    %cst_15 = arith.constant dense<0.000000e+00> : vector<16xf32>
    %39 = vector.multi_reduction <add>, %5, %cst_15 [1] : vector<16x32xf32> to vector<16xf32>
    %40 = vector.shape_cast %39 : vector<16xf32> to vector<16x1xf32>
    %41 = arith.mulf %5, %5 : vector<16x32xf32>
    %cst_16 = arith.constant dense<0.000000e+00> : vector<16xf32>
    %42 = vector.multi_reduction <add>, %41, %cst_16 [1] : vector<16x32xf32> to vector<16xf32>
    %43 = vector.shape_cast %42 : vector<16xf32> to vector<16x1xf32>
    %44 = tpu.concatenate %40, %43 in 1 : vector<16x1xf32>, vector<16x1xf32> -> vector<16x2xf32>
    %cst_17 = arith.constant dense<0.000000e+00> : vector<8x2xf32>
    %45 = tpu.matmul %25, %44, %cst_17 {dimension_numbers = #tpu.dot_dimension_numbers<[1], [0], [0], [1], [0, 0, 1, 1], [], []>} : vector<8x16xf32>, vector<16x2xf32>, vector<8x2xf32> -> vector<8x2xf32>
    %cst_18 = arith.constant 1.562500e-02 : f32
    %46 = vector.broadcast %cst_18 : f32 to vector<8x2xf32>
    %47 = arith.mulf %45, %46 : vector<8x2xf32>
    %48 = vector.extract_strided_slice %47 {offsets = [0, 0], sizes = [8, 1], strides = [1, 1]} : vector<8x2xf32> to vector<8x1xf32>
    %49 = vector.extract_strided_slice %47 {offsets = [0, 1], sizes = [8, 1], strides = [1, 1]} : vector<8x2xf32> to vector<8x1xf32>
    %50 = arith.mulf %48, %48 : vector<8x1xf32>
    %51 = arith.subf %49, %50 : vector<8x1xf32>
    %cst_19 = arith.constant 9.99999974E-6 : f32
    %52 = vector.broadcast %cst_19 : f32 to vector<8x1xf32>
    %53 = arith.addf %51, %52 : vector<8x1xf32>
    %54 = math.rsqrt %53 : vector<8x1xf32>
    %55 = tpu.concatenate %48, %54 in 1 : vector<8x1xf32>, vector<8x1xf32> -> vector<8x2xf32>
    %cst_20 = arith.constant dense<0.000000e+00> : vector<16x2xf32>
    %56 = tpu.matmul %38, %55, %cst_20 {dimension_numbers = #tpu.dot_dimension_numbers<[1], [0], [0], [1], [0, 0, 1, 1], [], []>} : vector<16x8xf32>, vector<8x2xf32>, vector<16x2xf32> -> vector<16x2xf32>
    %57 = vector.extract_strided_slice %56 {offsets = [0, 0], sizes = [16, 1], strides = [1, 1]} : vector<16x2xf32> to vector<16x1xf32>
    %58 = vector.extract_strided_slice %56 {offsets = [0, 1], sizes = [16, 1], strides = [1, 1]} : vector<16x2xf32> to vector<16x1xf32>
    %59 = arith.mulf %58, %0 : vector<16x1xf32>
    %60 = arith.mulf %59, %10 : vector<16x1xf32>
    %61 = arith.mulf %57, %58 : vector<16x1xf32>
    %62 = arith.mulf %61, %0 : vector<16x1xf32>
    %63 = arith.subf %1, %62 : vector<16x1xf32>
    %64 = arith.mulf %63, %10 : vector<16x1xf32>
    %65 = arith.addf %64, %12 : vector<16x1xf32>
    %66 = vector.broadcast %60 : vector<16x1xf32> to vector<16x32xf32>
    %67 = arith.mulf %5, %66 : vector<16x32xf32>
    %68 = vector.broadcast %65 : vector<16x1xf32> to vector<16x32xf32>
    %69 = arith.addf %67, %68 : vector<16x32xf32>
    %cst_21 = arith.constant 2.000000e+01 : f32
    %70 = vector.broadcast %cst_21 : f32 to vector<16x32xf32>
    %71 = arith.minimumf %69, %70 : vector<16x32xf32>
    %72 = arith.truncf %71 : vector<16x32xf32> to vector<16x32xbf16>
    %73 = math.exp %72 : vector<16x32xbf16>
    %cst_22 = arith.constant 2.000000e+00 : bf16
    %74 = vector.broadcast %cst_22 : bf16 to vector<16x32xbf16>
    %75 = arith.addf %74, %73 : vector<16x32xbf16>
    %76 = arith.mulf %73, %75 : vector<16x32xbf16>
    %77 = arith.extf %76 : vector<16x32xbf16> to vector<16x32xf32>
    %78 = arith.mulf %69, %77 : vector<16x32xf32>
    %cst_23 = arith.constant 2.000000e+00 : f32
    %79 = vector.broadcast %cst_23 : f32 to vector<16x32xf32>
    %80 = arith.addf %77, %79 : vector<16x32xf32>
    %81 = tpu.reciprocal %80 {approx = true} : vector<16x32xf32> -> vector<16x32xf32>
    %82 = arith.mulf %78, %81 : vector<16x32xf32>
    %83 = arith.truncf %82 : vector<16x32xf32> to vector<16x32xbf16>
    %cst_24 = arith.constant 0.000000e+00 : bf16
    %84 = vector.broadcast %cst_24 : bf16 to vector<16x96xbf16>
    %85 = tpu.concatenate %83, %84 in 1 : vector<16x32xbf16>, vector<16x96xbf16> -> vector<16x128xbf16>
    %cst_25 = arith.constant 0.000000e+00 : bf16
    %86 = vector.broadcast %cst_25 : bf16 to vector<16x2xbf16>
    %87 = tpu.concatenate %85, %86 in 1 : vector<16x128xbf16>, vector<16x2xbf16> -> vector<16x130xbf16>
    %88 = vector.extract_strided_slice %87 {offsets = [0, 0], sizes = [16, 128], strides = [1, 1]} : vector<16x130xbf16> to vector<16x128xbf16>
    %89 = vector.extract_strided_slice %87 {offsets = [0, 1], sizes = [16, 128], strides = [1, 1]} : vector<16x130xbf16> to vector<16x128xbf16>
    %90 = vector.extract_strided_slice %87 {offsets = [0, 2], sizes = [16, 128], strides = [1, 1]} : vector<16x130xbf16> to vector<16x128xbf16>
    %91 = tpu.concatenate %88, %89, %90 in 0 : vector<16x128xbf16>, vector<16x128xbf16>, vector<16x128xbf16> -> vector<48x128xbf16>
    %cst_26 = arith.constant dense<0.000000e+00> : vector<32x128xf32>
    %92 = tpu.matmul %3, %91, %cst_26 {dimension_numbers = #tpu.dot_dimension_numbers<[1], [0], [0], [1], [0, 0, 1, 1], [], []>} : vector<32x48xbf16>, vector<48x128xbf16>, vector<32x128xf32> -> vector<32x128xf32>
    %93 = vector.broadcast %2 : vector<32x1xf32> to vector<32x128xf32>
    %94 = arith.addf %92, %93 : vector<32x128xf32>
    %c0_27 = arith.constant 0 : index
    %c0_28 = arith.constant 0 : index
    %c0_29 = arith.constant 0 : index
    %95 = vector.load %arg5[%c0_27, %c0_28, %c0_29] : memref<1x32x128xf32, #tpu.memory_space<vmem>>, vector<1x32x128xf32>
    %96 = vector.shape_cast %95 : vector<1x32x128xf32> to vector<32x128xf32>
    %97 = vector.shape_cast %94 : vector<32x128xf32> to vector<1x32x128xf32>
    tpu.vector_store %arg5[%c0_27, %c0_28, %c0_29], %97 {strides = array<i32>} : memref<1x32x128xf32, #tpu.memory_space<vmem>>, vector<1x32x128xf32>,
    return
  }
  func.func @transform_0(%arg0: i32) -> (i32, i32, i32) {
    %c0_i32 = arith.constant 0 : i32
    %c0_i32_0 = arith.constant 0 : i32
    %c0_i32_1 = arith.constant 0 : i32
    return %arg0, %c0_i32, %c0_i32_0 : i32, i32, i32
  }
  func.func @transform_1(%arg0: i32) -> (i32, i32, i32) {
    %c0_i32 = arith.constant 0 : i32
    %c0_i32_0 = arith.constant 0 : i32
    %c0_i32_1 = arith.constant 0 : i32
    return %arg0, %c0_i32, %c0_i32_0 : i32, i32, i32
  }
  func.func @transform_2(%arg0: i32) -> (i32, i32) {
    %c0_i32 = arith.constant 0 : i32
    %c0_i32_0 = arith.constant 0 : i32
    %c0_i32_1 = arith.constant 0 : i32
    return %c0_i32, %c0_i32_0 : i32, i32
  }
  func.func @transform_3(%arg0: i32) -> (i32, i32) {
    %c0_i32 = arith.constant 0 : i32
    %c0_i32_0 = arith.constant 0 : i32
    %c0_i32_1 = arith.constant 0 : i32
    return %c0_i32, %c0_i32_0 : i32, i32
  }
  func.func @transform_4(%arg0: i32) -> (i32, i32, i32) {
    %c0_i32 = arith.constant 0 : i32
    %c0_i32_0 = arith.constant 0 : i32
    %c0_i32_1 = arith.constant 0 : i32
    return %arg0, %c0_i32, %c0_i32_0 : i32, i32, i32
  }
}

</mosaic_0001>

<llo_original>
// kernel: tpu_custom_call.1
$region0: #{tpu_custom_call.1}
  #allocation0 [shape = 'u32[]', space=smem, size = 0x4, offset = 0x4, fixed_abs, tag = 'smem constant byte address 0x4 - core index']
  #allocation1 [shape = 'u32[144,128]{1,0:T(1,128)}', space=vmem, size = 0x12000, scoped, tag = 'internal scratch']
  %s0 = inlined_call_operand.vmem [shape: f32[2,16,32], index: 0, kind: input, shape index: {}]
  %s1 = inlined_call_operand.vmem [shape: f32[2,32,1], index: 1, kind: input, shape index: {}]
  %s2 = inlined_call_operand.vmem [shape: f32[32,3], index: 2, kind: input, shape index: {}]
  %s3 = inlined_call_operand.vmem [shape: bf16[32,48], index: 3, kind: input, shape index: {}]
  %s4 = inlined_call_operand.hbm [shape: f32[2,32,128], index: 4, kind: output, shape index: {}]
  %s5 = sld [smem:[#allocation0]]
  $region49: #{tpu_custom_call.1} parent=0
    _
  %s7 = ssub.s32 1, %s5
  %s8 = scalar_select 0, %s7, %s5
  $region1: #{tpu_custom_call.1} parent=0
    #allocation2 [shape = 'u8[32768]{0}', space=vmem, size = 0x8000, scoped, tag = 'output window, operand 0']
    #allocation3 [shape = 's32[2]{0}', space=sflag, size = 0x8, scoped, tag = 'scoped memory for tpu_custom_call.1']
    %9 = vsyncpa [#allocation3], 0
    %s10 = scalar_lea.sflag [#allocation3], 1
    %11 = vsyncpa %s10, 0
    loop: start=0, step=1, limit=4
    $region2: #{tpu_custom_call.1} parent=1 // loop_pre_header
      _
    $region3: #{tpu_custom_call.1} parent=1 // loop_header
      %s13 = sphi 0, %s17
      %p14 = scmp.ge.s32.totalorder %s13, 4
      %s23 = sphi 0, %s25
      %s26 = sphi 0, %s23
      %s27 = sphi 0, %s26
      %s43 = sphi 0, %s27
      %s49 = sphi 0, %s51
      %s52 = sphi 0, %s49
      %s53 = sphi 0, %s52
      %s69 = sphi 0, %s53
      %s73 = sphi 0, %s73
      %s75 = sphi 0, %s73
      %s76 = sphi 0, %s75
      %s90 = sphi 0, %s76
      %s94 = sphi 0, %s94
      %s96 = sphi 0, %s94
      %s97 = sphi 0, %s96
      %s111 = sphi 0, %s97
      %s117 = sphi 0, %s119
      %s120 = sphi 0, %s117
      %s121 = sphi 0, %s120
      %s137 = sphi 0, %s121
    $region4: #{tpu_custom_call.1} parent=1 // loop_header_branch
      %16 = sbr.rel (%p14) target = $region8
    $region5: #{tpu_custom_call.1} parent=1 // loop_body
      %s18 = ssub.s32 %s13, 1
      %s19 = ssub.s32 %s13, 2
      %s20 = sadd.s32 %s13, 1
      %s21 = ssub.s32 %s13, %s20
      %p22 = scmp.eq.s32.totalorder %s21, 0
      %s24 = sadd.s32 %s23, 1
      %s25 = scalar_select %p22, %s23, %s24
      %p28 = pneg %p22
      %p29 = scmp.eq.s32.totalorder %s13, 1
      %p30 = por %p28, %p29
      %p31 = scmp.ne.s32.totalorder %s23, %s26
      %p32 = scmp.eq.s32.totalorder %s13, 0
      %p33 = por %p31, %p32
      %p34 = scmp.ne.s32.totalorder %s23, %s26
      %p35 = scmp.eq.s32.totalorder %s18, 1
      %p36 = por %p34, %p35
      %p37 = scmp.ne.s32.totalorder %s26, %s27
      %p38 = scmp.eq.s32.totalorder %s18, 0
      %p39 = por %p37, %p38
      %p40 = scmp.ne.s32.totalorder %s26, %s27
      %p41 = scmp.eq.s32.totalorder %s19, 1
      %p42 = por %p40, %p41
      %p44 = scmp.ne.s32.totalorder %s27, %s43
      %p45 = scmp.eq.s32.totalorder %s19, 0
      %p46 = por %p44, %p45
      %s47 = ssub.s32 %s13, %s20
      %p48 = scmp.eq.s32.totalorder %s47, 0
      %s50 = sadd.s32 %s49, 1
      %s51 = scalar_select %p48, %s49, %s50
      %p54 = pneg %p48
      %p55 = scmp.eq.s32.totalorder %s13, 1
      %p56 = por %p54, %p55
      %p57 = scmp.ne.s32.totalorder %s49, %s52
      %p58 = scmp.eq.s32.totalorder %s13, 0
      %p59 = por %p57, %p58
      %p60 = scmp.ne.s32.totalorder %s49, %s52
      %p61 = scmp.eq.s32.totalorder %s18, 1
      %p62 = por %p60, %p61
      %p63 = scmp.ne.s32.totalorder %s52, %s53
      %p64 = scmp.eq.s32.totalorder %s18, 0
      %p65 = por %p63, %p64
      %p66 = scmp.ne.s32.totalorder %s52, %s53
      %p67 = scmp.eq.s32.totalorder %s19, 1
      %p68 = por %p66, %p67
      %p70 = scmp.ne.s32.totalorder %s53, %s69
      %p71 = scmp.eq.s32.totalorder %s19, 0
      %p72 = por %p70, %p71
      %s74 = sadd.s32 %s73, 1
      %p77 = scmp.eq.s32.totalorder %s13, 1
      %p78 = scmp.ne.s32.totalorder %s73, %s75
      %p79 = scmp.eq.s32.totalorder %s13, 0
      %p80 = por %p78, %p79
      %p81 = scmp.ne.s32.totalorder %s73, %s75
      %p82 = scmp.eq.s32.totalorder %s18, 1
      %p83 = por %p81, %p82
      %p84 = scmp.ne.s32.totalorder %s75, %s76
      %p85 = scmp.eq.s32.totalorder %s18, 0
      %p86 = por %p84, %p85
      %p87 = scmp.ne.s32.totalorder %s75, %s76
      %p88 = scmp.eq.s32.totalorder %s19, 1
      %p89 = por %p87, %p88
      %p91 = scmp.ne.s32.totalorder %s76, %s90
      %p92 = scmp.eq.s32.totalorder %s19, 0
      %p93 = por %p91, %p92
      %s95 = sadd.s32 %s94, 1
      %p98 = scmp.eq.s32.totalorder %s13, 1
      %p99 = scmp.ne.s32.totalorder %s94, %s96
      %p100 = scmp.eq.s32.totalorder %s13, 0
      %p101 = por %p99, %p100
      %p102 = scmp.ne.s32.totalorder %s94, %s96
      %p103 = scmp.eq.s32.totalorder %s18, 1
      %p104 = por %p102, %p103
      %p105 = scmp.ne.s32.totalorder %s96, %s97
      %p106 = scmp.eq.s32.totalorder %s18, 0
      %p107 = por %p105, %p106
      %p108 = scmp.ne.s32.totalorder %s96, %s97
      %p109 = scmp.eq.s32.totalorder %s19, 1
      %p110 = por %p108, %p109
      %p112 = scmp.ne.s32.totalorder %s97, %s111
      %p113 = scmp.eq.s32.totalorder %s19, 0
      %p114 = por %p112, %p113
      %s115 = ssub.s32 %s13, %s20
      %p116 = scmp.eq.s32.totalorder %s115, 0
      %s118 = sadd.s32 %s117, 1
      %s119 = scalar_select %p116, %s117, %s118
      %p122 = pneg %p116
      %p123 = scmp.eq.s32.totalorder %s13, 1
      %p124 = por %p122, %p123
      %p125 = scmp.ne.s32.totalorder %s117, %s120
      %p126 = scmp.eq.s32.totalorder %s13, 0
      %p127 = por %p125, %p126
      %p128 = scmp.ne.s32.totalorder %s117, %s120
      %p129 = scmp.eq.s32.totalorder %s18, 1
      %p130 = por %p128, %p129
      %p131 = scmp.ne.s32.totalorder %s120, %s121
      %p132 = scmp.eq.s32.totalorder %s18, 0
      %p133 = por %p131, %p132
      %p134 = scmp.ne.s32.totalorder %s120, %s121
      %p135 = scmp.eq.s32.totalorder %s19, 1
      %p136 = por %p134, %p135
      %p138 = scmp.ne.s32.totalorder %s121, %s137
      %p139 = scmp.eq.s32.totalorder %s19, 0
      %p140 = por %p138, %p139
      %p141 = scmp.le.s32.totalorder 1, %s13
      %p142 = scmp.lt.s32.totalorder %s13, 3
      %p143 = pnand %p141, %p142
      %p144 = pneg %p143
      // Predicated region
      $region9: #{tpu_custom_call.1} parent=5 // pred_check
        _
      $region10: #{tpu_custom_call.1} parent=5 // pred_check_branch
        %146 = sbr.rel (%p143) target = $region12
      $region11: #{tpu_custom_call.1} parent=5 // pred_region
        %s147 = ssub.s32 %s13, 1
        // Predicated region
        $region13: #{tpu_custom_call.1} parent=11 // pred_check
          %p148 = pneg %p86
        $region14: #{tpu_custom_call.1} parent=11 // pred_check_branch
          %150 = sbr.rel (%p148) target = $region16
        $region15: #{tpu_custom_call.1} parent=11 // pred_region
          _
        $region16: #{tpu_custom_call.1} parent=11 // pred_fallthru
          _
        // Predicated region
        $region17: #{tpu_custom_call.1} parent=11 // pred_check
          %p151 = pneg %p107
        $region18: #{tpu_custom_call.1} parent=11 // pred_check_branch
          %153 = sbr.rel (%p151) target = $region20
        $region19: #{tpu_custom_call.1} parent=11 // pred_region
          _
        $region20: #{tpu_custom_call.1} parent=11 // pred_fallthru
          _
      $region12: #{tpu_custom_call.1} parent=5 // pred_fallthru
        _
      %p154 = scmp.lt.s32.totalorder %s13, 2
      // Predicated region
      $region21: #{tpu_custom_call.1} parent=5 // pred_check
        %p155 = pneg %p154
      $region22: #{tpu_custom_call.1} parent=5 // pred_check_branch
        %157 = sbr.rel (%p155) target = $region24
      $region23: #{tpu_custom_call.1} parent=5 // pred_region
        // Predicated region
        $region25: #{tpu_custom_call.1} parent=23 // pred_check
          %p158 = pneg %p33
        $region26: #{tpu_custom_call.1} parent=23 // pred_check_branch
          %160 = sbr.rel (%p158) target = $region28
        $region27: #{tpu_custom_call.1} parent=23 // pred_region
          %p161 = scmp.lt.s32.totalorder %s13, 1
          %s162 = scalar_select %p161, %s13, 1
          %s163 = smul.addr %s162, 2
          %s164 = smul.addr %s163, 8
          %s165 = scalar_lea.vmem %s0, %s164
        $region28: #{tpu_custom_call.1} parent=23 // pred_fallthru
          _
        // Predicated region
        $region29: #{tpu_custom_call.1} parent=23 // pred_check
          %p166 = pneg %p59
        $region30: #{tpu_custom_call.1} parent=23 // pred_check_branch
          %168 = sbr.rel (%p166) target = $region32
        $region31: #{tpu_custom_call.1} parent=23 // pred_region
          %p169 = scmp.lt.s32.totalorder %s13, 1
          %s170 = scalar_select %p169, %s13, 1
          %s171 = smul.addr %s170, 4
          %s172 = smul.addr %s171, 8
          %s173 = scalar_lea.vmem %s1, %s172
        $region32: #{tpu_custom_call.1} parent=23 // pred_fallthru
          _
      $region24: #{tpu_custom_call.1} parent=5 // pred_fallthru
        _
      %p174 = scmp.le.s32.totalorder 1, %s13
      %p175 = scmp.lt.s32.totalorder %s13, 3
      %p176 = pnand %p174, %p175
      %p177 = pneg %p176
      // Predicated region
      $region33: #{tpu_custom_call.1} parent=5 // pred_check
        _
      $region34: #{tpu_custom_call.1} parent=5 // pred_check_branch
        %179 = sbr.rel (%p176) target = $region36
      $region35: #{tpu_custom_call.1} parent=5 // pred_region
        %s180 = ssub.s32 %s13, 1
        %p181 = scmp.lt.s32.totalorder %s18, 1
        %s182 = scalar_select %p181, %s18, 1
        %s183 = smul.addr %s182, 2
        %s184 = smul.addr %s183, 8
        %s185 = scalar_lea.vmem %s0, %s184
        %p186 = pneg %p39
        %p187 = pneg %p36
        %p188 = scmp.lt.s32.totalorder %s18, 1
        %s189 = scalar_select %p188, %s18, 1
        %s190 = smul.addr %s189, 4
        %s191 = smul.addr %s190, 8
        %s192 = scalar_lea.vmem %s1, %s191
        %p193 = pneg %p65
        %p194 = pneg %p62
        %p195 = pneg %p86
        %p196 = pneg %p83
        %p197 = pneg %p107
        %p198 = pneg %p104
        %p199 = pneg %p133
        %p200 = pneg %p130
        %s201 = sand.u32 %s120, 1
        %s202 = scalar_lea.sflag [#allocation3], %s201
        %s203 = sand.u32 %s120, 1
        %s204 = smul.addr %s203, 32
        %s205 = scalar_lea.vmem [#allocation2], %s204
        %p206 = scmp.lt.s32.totalorder %s18, 1
        %s207 = scalar_select %p206, %s18, 1
        %s208 = smul.addr %s207, 2
        %s209 = smul.addr %s208, 8
        %s210 = scalar_lea.vmem %s0, %s209
        %p211 = scmp.lt.s32.totalorder %s18, 1
        %s212 = scalar_select %p211, %s18, 1
        %s213 = smul.addr %s212, 4
        %s214 = smul.addr %s213, 8
        %s215 = scalar_lea.vmem %s1, %s214
        %v218 = vld [vmem:[%s2] sm:$0xff]
        %v219 = vld [vmem:[%s2 + $0x8] sm:$0xff]
        %v220 = vld [vmem:[%s2 + $0x10] sm:$0xff]
        %v221 = vld [vmem:[%s2 + $0x18] sm:$0xff]
        %v222 = vld [vmem:[%s3] sm:$0xf]
        %v223 = vld [vmem:[%s3 + $0x4] sm:$0xf]
        %v224 = vld [vmem:[%s3 + $0x8] sm:$0xf]
        %v225 = vld [vmem:[%s3 + $0xc] sm:$0xf]
        %v226 = vld [vmem:[%s210] sm:$0xff]
        %v227 = vld [vmem:[%s210 + $0x8] sm:$0xff]
        %v228 = vld [vmem:[%s215] sm:$0xff]
        %v229 = vld [vmem:[%s215 + $0x8] sm:$0xff]
        %v230 = vld [vmem:[%s215 + $0x10] sm:$0xff]
        %v231 = vld [vmem:[%s215 + $0x18] sm:$0xff]
        %v232 = vadd.f32 %v228, 1.0
        %v233 = vadd.f32 %v229, 1.0
        %v234 = vlaneseq
        %v235 = vand.u32 %v234, 127
        %v236 = vlaneseq
        %v237 = vshrl.u32 %v236, 7
        %v238 = vmul.u32 %v237, 2
        %vm239 = vcmp.ge.s32.totalorder %v235, %v238
        %v240 = vadd.s32 %v237, 1
        %v241 = vmul.u32 %v240, 2
        %vm242 = vcmp.lt.s32.totalorder %v235, %v241
        %vm243 = vmand %vm239, %vm242
        %v244 = vsel %vm243, 1, 0
        %v245 = vcvt.s32.f32 %v244
        %v246 = vadd.s32 %v237, 8
        %v247 = vmul.u32 %v235, 2
        %vm248 = vcmp.ge.s32.totalorder %v237, %v247
        %vm249 = vcmp.ge.s32.totalorder %v246, %v247
        %v250 = vadd.s32 %v235, 1
        %v251 = vmul.u32 %v250, 2
        %vm252 = vcmp.lt.s32.totalorder %v237, %v251
        %vm253 = vcmp.lt.s32.totalorder %v246, %v251
        %vm254 = vmand %vm248, %vm252
        %vm255 = vmand %vm249, %vm253
        %v256 = vsel %vm254, 1, 0
        %v257 = vsel %vm255, 1, 0
        %v258 = vcvt.s32.f32 %v256
        %v259 = vcvt.s32.f32 %v257
        %vm260 = vcmask 261120
        %v261 = vsel %vm260, %v226, 0.0
        %262 = vadd.xlane.f32.xlu0 %v261
        %v263 = vpop.xlane.xlu0 %262
        %v264 = vsel %vm260, %v227, 0.0
        %265 = vadd.xlane.f32.xlu0 %v264
        %v266 = vpop.xlane.xlu0 %265
        %v267 = vmul.f32 %v226, %v226
        %v268 = vmul.f32 %v227, %v227
        %v269 = vsel %vm260, %v267, 0.0
        %270 = vadd.xlane.f32.xlu0 %v269
        %v271 = vpop.xlane.xlu0 %270
        %v272 = vsel %vm260, %v268, 0.0
        %273 = vadd.xlane.f32.xlu0 %v272
        %v274 = vpop.xlane.xlu0 %273
        %vm275 = vcmask 7168
        %v276 = vsel %vm275, %v263, %v271
        %v277 = vsel %vm275, %v266, %v274
        %vm278 = vcmask 130048
        %v280 = vsel %vm278, %v245, 0
        %282 = vmatprep.subr.mxu0 0.0
        %283 = vmatpush1.msra.mxu0 %v276
        %284 = vmatprep.subr.mxu0 0.0
        %285 = vmatpush1.msra.mxu0 %v277
        %286 = vmatprep.subr.mxu0 0.0
        %287 = vmatpush1.msra.mxu0 0.0
        %288 = vmatprep.subr.mxu0 0.0
        %289 = vmatpush1.msra.mxu0 0.0
        %290 = vmatprep.subr.mxu0 0.0
        %291 = vmatpush1.msra.mxu0 0.0
        %292 = vmatprep.subr.mxu0 0.0
        %293 = vmatpush1.msra.mxu0 0.0
        %294 = vmatprep.subr.mxu0 0.0
        %295 = vmatpush1.msra.mxu0 0.0
        %296 = vmatprep.subr.mxu0 0.0
        %297 = vmatpush1.msra.mxu0 0.0
        %298 = vmatprep.subr.mxu0 0.0
        %299 = vmatpush1.msra.mxu0 0.0
        %300 = vmatprep.subr.mxu0 0.0
        %301 = vmatpush1.msra.mxu0 0.0
        %302 = vmatprep.subr.mxu0 0.0
        %303 = vmatpush1.msra.mxu0 0.0
        %304 = vmatprep.subr.mxu0 0.0
        %305 = vmatpush1.msra.mxu0 0.0
        %306 = vmatprep.subr.mxu0 0.0
        %307 = vmatpush1.msra.mxu0 0.0
        %308 = vmatprep.subr.mxu0 0.0
        %309 = vmatpush1.msra.mxu0 0.0
        %310 = vmatprep.subr.mxu0 0.0
        %311 = vmatpush1.msra.mxu0 0.0
        %312 = vmatprep.subr.mxu0 0.0
        %313 = vmatpush1.msra.mxu0 0.0
        %314 = vmatprep.subr.mxu0 0.0
        %315 = vmatpush1.msra.mxu0 0.0
        %316 = vmatprep.subr.mxu0 0.0
        %317 = vmatpush1.msra.mxu0 0.0
        %318 = vmatprep.subr.mxu0 0.0
        %319 = vmatpush1.msra.mxu0 0.0
        %320 = vmatprep.subr.mxu0 0.0
        %321 = vmatpush1.msra.mxu0 0.0
        %322 = vmatprep.subr.mxu0 0.0
        %323 = vmatpush1.msra.mxu0 0.0
        %324 = vmatprep.subr.mxu0 0.0
        %325 = vmatpush1.msra.mxu0 0.0
        %326 = vmatprep.subr.mxu0 0.0
        %327 = vmatpush1.msra.mxu0 0.0
        %328 = vmatprep.subr.mxu0 0.0
        %329 = vmatpush1.msra.mxu0 0.0
        %330 = vmatprep.subr.mxu0 0.0
        %331 = vmatpush1.msra.mxu0 0.0
        %332 = vmatprep.subr.mxu0 0.0
        %333 = vmatpush1.msra.mxu0 0.0
        %334 = vmatprep.subr.mxu0 0.0
        %335 = vmatpush1.msra.mxu0 0.0
        %336 = vmatprep.subr.mxu0 0.0
        %337 = vmatpush1.msra.mxu0 0.0
        %338 = vmatprep.subr.mxu0 0.0
        %339 = vmatpush1.msra.mxu0 0.0
        %340 = vmatprep.subr.mxu0 0.0
        %341 = vmatpush1.msra.mxu0 0.0
        %342 = vmatprep.subr.mxu0 0.0
        %343 = vmatpush1.msra.mxu0 0.0
        %344 = vmatprep.subr.mxu0 0.0
        %345 = vmatpush1.msra.mxu0 0.0
        %346 = vmatprep.mubr.f32.mxu0 0.0
        %347 = vmatmul.mubr.f32.gmra.mrb[0].mxu0 %v280
        %v348 = vpop.f32.mrb[0].mxu0
        %v349 = vadd.f32 0.0, %v348
        %v350 = vpop.f32.mrb[0].mxu0
        %351 = vdwg.mxu0
        %v352 = vmul.f32 %v349, 0.015625
        %v353 = vmul.f32 %v352, %v352
        %355 = vrot.lane.b32.xlu0 %v353, 1
        %v356 = vpop.permute.xlu0 %355
        %v358 = vsub.f32 %v352, %v356
        %v359 = vadd.f32 %v358, 1e-05
        %v360 = vrsqrt.pop %v359
        %v361 = vsel %vm275, %v352, %v360
        %vm362 = vcmask 64512
        %v364 = vsel %vm362, %v258, 0
        %v367 = vsel %vm362, %v259, 0
        %369 = vmatprep.subr.mxu0 0.0
        %370 = vmatpush1.msra.mxu0 %v361
        %371 = vmatprep.subr.mxu0 0.0
        %372 = vmatpush1.msra.mxu0 0.0
        %373 = vmatprep.subr.mxu0 0.0
        %374 = vmatpush1.msra.mxu0 0.0
        %375 = vmatprep.subr.mxu0 0.0
        %376 = vmatpush1.msra.mxu0 0.0
        %377 = vmatprep.subr.mxu0 0.0
        %378 = vmatpush1.msra.mxu0 0.0
        %379 = vmatprep.subr.mxu0 0.0
        %380 = vmatpush1.msra.mxu0 0.0
        %381 = vmatprep.subr.mxu0 0.0
        %382 = vmatpush1.msra.mxu0 0.0
        %383 = vmatprep.subr.mxu0 0.0
        %384 = vmatpush1.msra.mxu0 0.0
        %385 = vmatprep.subr.mxu0 0.0
        %386 = vmatpush1.msra.mxu0 0.0
        %387 = vmatprep.subr.mxu0 0.0
        %388 = vmatpush1.msra.mxu0 0.0
        %389 = vmatprep.subr.mxu0 0.0
        %390 = vmatpush1.msra.mxu0 0.0
        %391 = vmatprep.subr.mxu0 0.0
        %392 = vmatpush1.msra.mxu0 0.0
        %393 = vmatprep.subr.mxu0 0.0
        %394 = vmatpush1.msra.mxu0 0.0
        %395 = vmatprep.subr.mxu0 0.0
        %396 = vmatpush1.msra.mxu0 0.0
        %397 = vmatprep.subr.mxu0 0.0
        %398 = vmatpush1.msra.mxu0 0.0
        %399 = vmatprep.subr.mxu0 0.0
        %400 = vmatpush1.msra.mxu0 0.0
        %401 = vmatprep.subr.mxu0 0.0
        %402 = vmatpush1.msra.mxu0 0.0
        %403 = vmatprep.subr.mxu0 0.0
        %404 = vmatpush1.msra.mxu0 0.0
        %405 = vmatprep.subr.mxu0 0.0
        %406 = vmatpush1.msra.mxu0 0.0
        %407 = vmatprep.subr.mxu0 0.0
        %408 = vmatpush1.msra.mxu0 0.0
        %409 = vmatprep.subr.mxu0 0.0
        %410 = vmatpush1.msra.mxu0 0.0
        %411 = vmatprep.subr.mxu0 0.0
        %412 = vmatpush1.msra.mxu0 0.0
        %413 = vmatprep.subr.mxu0 0.0
        %414 = vmatpush1.msra.mxu0 0.0
        %415 = vmatprep.subr.mxu0 0.0
        %416 = vmatpush1.msra.mxu0 0.0
        %417 = vmatprep.subr.mxu0 0.0
        %418 = vmatpush1.msra.mxu0 0.0
        %419 = vmatprep.subr.mxu0 0.0
        %420 = vmatpush1.msra.mxu0 0.0
        %421 = vmatprep.subr.mxu0 0.0
        %422 = vmatpush1.msra.mxu0 0.0
        %423 = vmatprep.subr.mxu0 0.0
        %424 = vmatpush1.msra.mxu0 0.0
        %425 = vmatprep.subr.mxu0 0.0
        %426 = vmatpush1.msra.mxu0 0.0
        %427 = vmatprep.subr.mxu0 0.0
        %428 = vmatpush1.msra.mxu0 0.0
        %429 = vmatprep.subr.mxu0 0.0
        %430 = vmatpush1.msra.mxu0 0.0
        %431 = vmatprep.subr.mxu0 0.0
        %432 = vmatpush1.msra.mxu0 0.0
        %433 = vmatprep.mubr.f32.mxu0 0.0
        %434 = vmatmul.mubr.f32.gmra.mrb[0].mxu0 %v364
        %v435 = vpop.f32.mrb[0].mxu0
        %v436 = vadd.f32 0.0, %v435
        %v437 = vpop.f32.mrb[0].mxu0
        %438 = vmatprep.mubr.f32.mxu0 0.0
        %439 = vmatmul.mubr.f32.gmra.mrb[0].mxu0 %v367
        %v440 = vpop.f32.mrb[0].mxu0
        %v441 = vadd.f32 0.0, %v440
        %v442 = vpop.f32.mrb[0].mxu0
        %443 = vdwg.mxu0
        %446 = vrot.lane.b32.xlu0 %v218, 1
        %v447 = vpop.permute.xlu0 %446
        %448 = vrot.lane.b32.xlu0 %v219, 1
        %v449 = vpop.permute.xlu0 %448
        %v452 = vmul.f32 %v436, %v447
        %v453 = vmul.f32 %v441, %v449
        %456 = vrot.lane.b32.xlu0 %v232, 1
        %v457 = vpop.permute.xlu0 %456
        %458 = vrot.lane.b32.xlu0 %v233, 1
        %v459 = vpop.permute.xlu0 %458
        %v462 = vmul.f32 %v452, %v457
        %v463 = vmul.f32 %v453, %v459
        %466 = vrot.lane.b32.xlu0 %v436, 127
        %v467 = vpop.permute.xlu0 %466
        %468 = vrot.lane.b32.xlu0 %v441, 127
        %v469 = vpop.permute.xlu0 %468
        %v472 = vmul.f32 %v436, %v467
        %v473 = vmul.f32 %v441, %v469
        %v474 = vmul.f32 %v472, %v218
        %v475 = vmul.f32 %v473, %v219
        %478 = vrot.lane.b32.xlu0 %v474, 1
        %v479 = vpop.permute.xlu0 %478
        %480 = vrot.lane.b32.xlu0 %v475, 1
        %v481 = vpop.permute.xlu0 %480
        %v484 = vsub.f32 %v218, %v479
        %v485 = vsub.f32 %v219, %v481
        %v486 = vmul.f32 %v484, %v457
        %v487 = vmul.f32 %v485, %v459
        %490 = vrot.lane.b32.xlu0 %v230, 1
        %v491 = vpop.permute.xlu0 %490
        %492 = vrot.lane.b32.xlu0 %v231, 1
        %v493 = vpop.permute.xlu0 %492
        %v496 = vadd.f32 %v486, %v491
        %v497 = vadd.f32 %v487, %v493
        %499 = vset.pattern.permute.xlu0 1
        %500 = vperm.xlu0 %499, %v462
        %v501 = vpop.permute.xlu0 %500
        %504 = vset.pattern.permute.xlu0 1
        %505 = vperm.xlu0 %504, %v463
        %v506 = vpop.permute.xlu0 %505
        %v508 = vmul.f32 %v226, %v501
        %v509 = vmul.f32 %v227, %v506
        %511 = vset.pattern.permute.xlu0 1
        %512 = vperm.xlu0 %511, %v496
        %v513 = vpop.permute.xlu0 %512
        %516 = vset.pattern.permute.xlu0 1
        %517 = vperm.xlu0 %516, %v497
        %v518 = vpop.permute.xlu0 %517
        %v520 = vadd.f32 %v508, %v513
        %v521 = vadd.f32 %v509, %v518
        %v522 = vmin.f32 %v520, 20.0
        %v523 = vmin.f32 %v521, 20.0
        %v524 = vpack.c.bf16 %v523, %v522
        %v526 = vmul.bf16 %v524, 1069105081
        %v527 = vpow.bf16.pop %v526
        %v528 = vadd.bf16 %v527, 1073758208
        %v529 = vmul.bf16 %v527, %v528
        %v530 = vunpack.c.l.bf16 %v529
        %v531 = vunpack.c.h.bf16 %v529
        %v532 = vmul.f32 %v520, %v530
        %v533 = vmul.f32 %v521, %v531
        %v534 = vadd.f32 %v530, 2.0
        %v535 = vadd.f32 %v531, 2.0
        %v536 = vrcp.pop %v534
        %v537 = vrcp.pop %v535
        %v538 = vmul.f32 %v532, %v536
        %v539 = vmul.f32 %v533, %v537
        %v540 = vpack.c.bf16 %v539, %v538
        %v543 = vsel %vm260, %v540, 0
        %547 = vrot.lane.b32.xlu0 %v543, 127
        %v548 = vpop.permute.xlu0 %547
        %549 = vrot.lane.b32.xlu0 0, 127
        %v550 = vpop.permute.xlu0 %549
        %vm551 = vcmask 1039360
        %v552 = vsel %vm551, %v548, %v550
        %554 = vrot.lane.b32.xlu0 %v543, 126
        %v555 = vpop.permute.xlu0 %554
        %556 = vrot.lane.b32.xlu0 0, 126
        %v557 = vpop.permute.xlu0 %556
        %vm558 = vcmask 1031168
        %v559 = vsel %vm558, %v555, %v557
        %561 = vset.pattern.permute.xlu0 2
        %562 = vperm.xlu0 %561, %v218
        %v563 = vpop.permute.xlu0 %562
        %565 = vset.pattern.permute.xlu0 2
        %566 = vperm.xlu0 %565, %v219
        %v567 = vpop.permute.xlu0 %566
        %570 = vset.pattern.permute.xlu0 2
        %571 = vperm.xlu0 %570, %v220
        %v572 = vpop.permute.xlu0 %571
        %575 = vset.pattern.permute.xlu0 2
        %576 = vperm.xlu0 %575, %v221
        %v577 = vpop.permute.xlu0 %576
        %v583 = vunpack.c.l.b16 %v222
        %v584 = vunpack.c.l.b16 %v223
        %v585 = vunpack.c.l.b16 %v224
        %v586 = vunpack.c.l.b16 %v225
        %v587 = vpack.c.b16 %v584, %v583
        %v588 = vpack.c.b16 %v586, %v585
        %vm589 = vcmask 392192
        %v591 = vsel %vm589, %v587, 0
        %v594 = vsel %vm589, %v588, 0
        %596 = vmatprep.subr.bf16.mxu0 0
        %597 = vmatpush1.bf16.msra.mxu0 %v543
        %598 = vmatprep.subr.bf16.mxu0 0
        %599 = vmatpush1.bf16.msra.mxu0 %v552
        %600 = vmatprep.subr.bf16.mxu0 0
        %601 = vmatpush1.bf16.msra.mxu0 %v559
        %602 = vmatprep.subr.bf16.mxu0 0
        %603 = vmatpush1.bf16.msra.mxu0 0
        %604 = vmatprep.subr.bf16.mxu0 0
        %605 = vmatpush1.bf16.msra.mxu0 0
        %606 = vmatprep.subr.bf16.mxu0 0
        %607 = vmatpush1.bf16.msra.mxu0 0
        %608 = vmatprep.subr.bf16.mxu0 0
        %609 = vmatpush1.bf16.msra.mxu0 0
        %610 = vmatprep.subr.bf16.mxu0 0
        %611 = vmatpush1.bf16.msra.mxu0 0
        %612 = vmatprep.subr.bf16.mxu0 0
        %613 = vmatpush1.bf16.msra.mxu0 0
        %614 = vmatprep.subr.bf16.mxu0 0
        %615 = vmatpush1.bf16.msra.mxu0 0
        %616 = vmatprep.subr.bf16.mxu0 0
        %617 = vmatpush1.bf16.msra.mxu0 0
        %618 = vmatprep.subr.bf16.mxu0 0
        %619 = vmatpush1.bf16.msra.mxu0 0
        %620 = vmatprep.subr.bf16.mxu0 0
        %621 = vmatpush1.bf16.msra.mxu0 0
        %622 = vmatprep.subr.bf16.mxu0 0
        %623 = vmatpush1.bf16.msra.mxu0 0
        %624 = vmatprep.subr.bf16.mxu0 0
        %625 = vmatpush1.bf16.msra.mxu0 0
        %626 = vmatprep.subr.bf16.mxu0 0
        %627 = vmatpush1.bf16.msra.mxu0 0
        %628 = vmatprep.mubr.bf16.mxu0 0
        %629 = vmatmul.mubr.bf16.gmra.mrb[0].mxu0 %v591
        %v630 = vpop.f32.mrb[0].mxu0
        %v631 = vadd.f32 %v563, %v630
        %v632 = vpop.f32.mrb[0].mxu0
        %v633 = vpop.f32.mrb[0].mxu0
        %v634 = vadd.f32 %v567, %v633
        %v635 = vpop.f32.mrb[0].mxu0
        %636 = vmatprep.mubr.bf16.mxu0 0
        %637 = vmatmul.mubr.bf16.gmra.mrb[0].mxu0 %v594
        %v638 = vpop.f32.mrb[0].mxu0
        %v639 = vadd.f32 %v572, %v638
        %v640 = vpop.f32.mrb[0].mxu0
        %v641 = vpop.f32.mrb[0].mxu0
        %v642 = vadd.f32 %v577, %v641
        %v643 = vpop.f32.mrb[0].mxu0
        %644 = vdwg.mxu0
        %645 = vst [vmem:[%s205] sm:$0xff] %v631
        %646 = vst [vmem:[%s205 + $0x8] sm:$0xff] %v634
        %647 = vst [vmem:[%s205 + $0x10] sm:$0xff] %v639
        %648 = vst [vmem:[%s205 + $0x18] sm:$0xff] %v642
        %s649 = sand.u32 %s120, 1
        %s650 = scalar_lea.sflag [#allocation3], %s649
        %s651 = sand.u32 %s120, 1
        %s652 = smul.addr %s651, 32
        %s653 = scalar_lea.vmem [#allocation2], %s652
        // Predicated region
        $region37: #{tpu_custom_call.1} parent=35 // pred_check
          %p654 = pneg %p130
        $region38: #{tpu_custom_call.1} parent=35 // pred_check_branch
          %656 = sbr.rel (%p654) target = $region40
        $region39: #{tpu_custom_call.1} parent=35 // pred_region
          %s658 = ssub.s32 512, 512
          %659 = vsyncadd %s650, %s658
          %s660 = smul.addr %s18, 4
          %s661 = smul.addr %s660, 128
          %s662 = scalar_lea.hbm %s4, %s661
          %s663 = sshll.u32 %s653, 4
          %s664 = int_to_ptr.vmem [resolvable:$true] %s663
          %669 = dma.vmem_to_hbm [thread:$0]  %s664, 512, %s662, %s650, 128, 128, 8
        $region40: #{tpu_custom_call.1} parent=35 // pred_fallthru
          _
      $region36: #{tpu_custom_call.1} parent=5 // pred_fallthru
        _
      %p670 = scmp.le.s32.totalorder 2, %s13
      // Predicated region
      $region41: #{tpu_custom_call.1} parent=5 // pred_check
        %p671 = pneg %p670
      $region42: #{tpu_custom_call.1} parent=5 // pred_check_branch
        %673 = sbr.rel (%p671) target = $region44
      $region43: #{tpu_custom_call.1} parent=5 // pred_region
        %s674 = ssub.s32 %s13, 2
        // Predicated region
        $region45: #{tpu_custom_call.1} parent=43 // pred_check
          %p675 = pneg %p136
        $region46: #{tpu_custom_call.1} parent=43 // pred_check_branch
          %677 = sbr.rel (%p675) target = $region48
        $region47: #{tpu_custom_call.1} parent=43 // pred_region
          %s678 = sand.u32 %s121, 1
          %s679 = scalar_lea.sflag [#allocation3], %s678
          %s680 = sand.u32 %s121, 1
          %s681 = smul.addr %s680, 32
          %s682 = scalar_lea.vmem [#allocation2], %s681
          %683 = dma.done %s679, 512
        $region48: #{tpu_custom_call.1} parent=43 // pred_fallthru
          _
      $region44: #{tpu_custom_call.1} parent=5 // pred_fallthru
        _
    $region6: #{tpu_custom_call.1} parent=1 // loop_footer
      %s17 = sadd.s32 1, %s13
    $region7: #{tpu_custom_call.1} parent=1 // loop_footer_branch
      %12 = sbr.rel target = $region3
    $region8: #{tpu_custom_call.1} parent=1 // loop_exit
      _
    %684 = vsyncpa [#allocation3], 1
    %s685 = scalar_lea.sflag [#allocation3], 1
    %686 = vsyncpa %s685, 1

</llo_original>
